<compile_context>
chip_gen: v7x
topology: tpu7x:2x2x1
jax: 0.10.0
libtpu: 0.0.40
codegen_flags: <defaults>
</compile_context>

<pallas_src>
import functools
from typing import NamedTuple, Tuple

import jax
import jax.numpy as jnp
from jax.experimental import pallas as pl
from jax.experimental.pallas import tpu as pltpu


LANE = 128
_MIB = 1024 * 1024


# ---------------------------------------------------------------------------
# Chip introspection (best effort, with conservative fallbacks)
# ---------------------------------------------------------------------------
@functools.lru_cache(maxsize=None)
def _chip_profile():
    """Returns (vmem_capacity_bytes, device_kind_lowercase)."""
    vmem_cap = 64 * _MIB  # conservative default (v7x per-TC VMEM)
    kind = ""
    try:
        info = pltpu.get_tpu_info()
        vmem_cap = int(getattr(info, "vmem_capacity_bytes", vmem_cap))
    except Exception:
        pass
    try:
        kind = jax.devices()[0].device_kind.lower()
    except Exception:
        pass
    return vmem_cap, kind


def _vmem_limit_bytes():
    cap, _ = _chip_profile()
    # ~80% of physical VMEM, always leaving >= 8 MiB headroom.
    return max(32 * _MIB, min(int(cap * 0.80), cap - 8 * _MIB))


def _fused_budget_bytes():
    # Resident weights + activation tiles must fit well under the scoped limit.
    return int(_vmem_limit_bytes() * 0.80)


def _default_row_tile():
    cap, kind = _chip_profile()
    # v7x: only 64 MiB VMEM.  v5e: cap the live f32 intermediate (1 vst slot).
    if cap <= 64 * _MIB or "v5" in kind:
        return 256
    return 512  # v6e-class: 128 MiB VMEM, ~85% HBM roofline at 512-wide tiles


def _is_multi_core_chip():
    cap, kind = _chip_profile()
    return "v7" in kind or cap <= 64 * _MIB


# ---------------------------------------------------------------------------
# Small helpers
# ---------------------------------------------------------------------------
def _round_up(x, m):
    return ((x + m - 1) // m) * m


def _row_align(dtype):
    itemsize = jnp.dtype(dtype).itemsize
    if itemsize >= 4:
        return 8
    if itemsize == 2:
        return 16
    return 32


def _pick_tile(dim, candidates):
    for c in candidates:
        if dim % c == 0:
            return c
    return dim  # dim is a multiple of 128 smaller than the candidates


def _resident_spec(shape):
    """Whole-array, constant-index block, single-buffered (weights stay put)."""
    try:
        return pl.BlockSpec(shape, lambda i: (0, 0), pipeline_mode=pl.Buffered(1))
    except TypeError:  # older API without pipeline_mode
        return pl.BlockSpec(shape, lambda i: (0, 0))


# ---------------------------------------------------------------------------
# Prepared (padded + cast) parameters: hoisted out of the per-call path.
# ---------------------------------------------------------------------------
class PreparedMLPParams(NamedTuple):
    wps: Tuple[jax.Array, ...]   # (Kp, Np) padded, compute dtype
    bps: Tuple[jax.Array, ...]   # (1, Np) padded, compute dtype
    in_dim: int
    out_dim: int


def prepare_mlp_params(params, compute_dtype=jnp.bfloat16):
    """Pad every feature dim up to a lane (128) multiple and cast ONCE."""
    cdt = jnp.dtype(compute_dtype)
    in_dim = params[0][0].shape[0]
    out_dim = params[-1][0].shape[1]
    dims = [w.shape[0] for w, _ in params] + [out_dim]
    padded = [_round_up(d, LANE) for d in dims]
    wps, bps = [], []
    for i, (w, b) in enumerate(params):
        Kp, Np = padded[i], padded[i + 1]
        wp = jnp.pad(w.astype(cdt), ((0, Kp - w.shape[0]), (0, Np - w.shape[1])))
        bp = jnp.pad(b.astype(cdt), (0, Np - b.shape[0])).reshape(1, Np)
        wps.append(wp)
        bps.append(bp)
    return PreparedMLPParams(tuple(wps), tuple(bps), in_dim, out_dim)


# ---------------------------------------------------------------------------
# Fused whole-MLP kernel: all weights/biases resident, one pass per row tile.
# ---------------------------------------------------------------------------
def _fused_mlp_kernel(*refs, num_layers):
    x_ref, o_ref = refs[0], refs[-1]
    h = x_ref[...]
    for i in range(num_layers):
        w_ref = refs[1 + 2 * i]
        b_ref = refs[2 + 2 * i]
        acc = jnp.dot(h, w_ref[...], preferred_element_type=jnp.float32)
        acc = acc + b_ref[...].astype(jnp.float32)
        if i < num_layers - 1:
            acc = jnp.maximum(acc, 0.0)
            h = acc.astype(w_ref.dtype)   # next matmul stays in compute dtype
        else:
            h = acc
    o_ref[...] = h.astype(o_ref.dtype)


def _fused_mlp(xp, wps, bps, *, tm, out_dtype, vmem_limit):
    Mp, K0p = xp.shape
    Np = wps[-1].shape[1]
    num_layers = len(wps)

    in_specs = [pl.BlockSpec((tm, K0p), lambda i: (i, 0))]
    operands = [xp]
    for wp, bp in zip(wps, bps):
        in_specs.append(_resident_spec(wp.shape))   # single-buffered resident W
        in_specs.append(_resident_spec(bp.shape))   # single-buffered resident b
        operands.append(wp)
        operands.append(bp)

    kernel = functools.partial(_fused_mlp_kernel, num_layers=num_layers)
    return pl.pallas_call(
        kernel,
        out_shape=jax.ShapeDtypeStruct((Mp, Np), out_dtype),
        grid_spec=pltpu.PrefetchScalarGridSpec(
            num_scalar_prefetch=0,
            grid=(Mp // tm,),
            in_specs=in_specs,
            out_specs=pl.BlockSpec((tm, Np), lambda i: (i, 0)),
        ),
        compiler_params=pltpu.CompilerParams(
            dimension_semantics=("parallel",),
            vmem_limit_bytes=vmem_limit,
        ),
    )(*operands)


# ---------------------------------------------------------------------------
# Fallback: per-layer 3-D tiled matmul + bias (+ relu) with f32 accumulator.
# ---------------------------------------------------------------------------
def _tiled_linear_kernel(x_ref, w_ref, b_ref, o_ref, acc_ref, *, apply_relu):
    k = pl.program_id(2)

    @pl.when(k == 0)
    def _():
        acc_ref[...] = jnp.zeros_like(acc_ref)

    acc_ref[...] += jnp.dot(x_ref[...], w_ref[...],
                            preferred_element_type=jnp.float32)

    @pl.when(k == pl.num_programs(2) - 1)
    def _():
        acc = acc_ref[...] + b_ref[...].astype(jnp.float32)
        if apply_relu:
            acc = jnp.maximum(acc, 0.0)
        o_ref[...] = acc.astype(o_ref.dtype)


def _tiled_linear(xp, wp, bp, *, apply_relu, tm, out_dtype, vmem_limit):
    Mp, Kp = xp.shape
    _, Np = wp.shape
    if _is_multi_core_chip():
        # v7x-class: 2x256x256 MXU wants >=256-wide N/K tiles, 64 MiB VMEM.
        tn = _pick_tile(Np, (512, 256, 128))
        tk = _pick_tile(Kp, (512, 256, 128))
    else:
        # v5e/v6e-class: 128 MiB VMEM, amortize per-grid-step overhead.
        tn = _pick_tile(Np, (512, 256, 128))
        tk = _pick_tile(Kp, (1024, 512, 256, 128))

    kernel = functools.partial(_tiled_linear_kernel, apply_relu=apply_relu)
    return pl.pallas_call(
        kernel,
        out_shape=jax.ShapeDtypeStruct((Mp, Np), out_dtype),
        grid_spec=pltpu.PrefetchScalarGridSpec(
            num_scalar_prefetch=0,
            grid=(Mp // tm, Np // tn, Kp // tk),
            in_specs=[
                pl.BlockSpec((tm, tk), lambda i, j, k: (i, k)),
                pl.BlockSpec((tk, tn), lambda i, j, k: (k, j)),
                pl.BlockSpec((1, tn), lambda i, j, k: (0, j)),
            ],
            out_specs=pl.BlockSpec((tm, tn), lambda i, j, k: (i, j)),
            scratch_shapes=[pltpu.VMEM((tm, tn), jnp.float32)],
        ),
        compiler_params=pltpu.CompilerParams(
            dimension_semantics=("parallel", "parallel", "arbitrary"),
            vmem_limit_bytes=vmem_limit,
        ),
    )(xp, wp, bp)


# ---------------------------------------------------------------------------
# Public forward
# ---------------------------------------------------------------------------
def mlp_forward(x, params, *, compute_dtype=jnp.bfloat16, tm_target=None,
                force_tiled=False, fused_weight_budget_bytes=None):
    """x: (..., input_dim) -> (..., output_dim).

    `params` is either a list of (W[in,out], b[out]) arrays, or a
    PreparedMLPParams (recommended for inference loops: padding + casting of
    the weights happens once, outside the forward pass).
    """
    if isinstance(params, PreparedMLPParams):
        prepared = params
    else:
        prepared = prepare_mlp_params(params, compute_dtype=compute_dtype)
    wps, bps = prepared.wps, prepared.bps
    in_dim, out_dim = prepared.in_dim, prepared.out_dim
    cdt = wps[0].dtype
    num_layers = len(wps)

    lead_shape = x.shape[:-1]
    assert x.shape[-1] == in_dim, (x.shape, in_dim)
    xf = x.reshape(-1, in_dim)
    M = xf.shape[0]
    K0p = wps[0].shape[0]
    Np_out = wps[-1].shape[1]

    vmem_limit = _vmem_limit_bytes()
    if fused_weight_budget_bytes is None:
        fused_weight_budget_bytes = _fused_budget_bytes()
    if tm_target is None:
        tm_target = _default_row_tile()

    # Row tiling: big MXU-friendly tiles, aligned to sublane packing of the
    # compute dtype (8 for f32, 16 for bf16, 32 for 8-bit); pad rows instead of
    # asserting divisibility.
    row_align = _row_align(cdt)
    tm = min(tm_target, _round_up(M, row_align))
    # On dual-TensorCore chips (v7x) keep >= 2 iterations on the parallel row
    # axis so both cores get work.
    if _is_multi_core_chip() and M > row_align and _round_up(M, tm) // tm < 2:
        tm = max(row_align, _round_up((M + 1) // 2, row_align))
    Mp = _round_up(M, tm)

    # Lane-dense, zero-padded activation tile (exact: padded W rows/cols and
    # biases are zero).
    xp = jnp.pad(xf.astype(cdt), ((0, Mp - M), (0, K0p - in_dim)))

    # Fused-path VMEM estimate: single-buffered resident weights + double
    # buffered x / out tiles + f32 intermediate spill headroom.
    itemsize = jnp.dtype(cdt).itemsize
    out_itemsize = jnp.dtype(x.dtype).itemsize
    weight_bytes = sum(int(w.size) * w.dtype.itemsize + int(b.size) * b.dtype.itemsize
                       for w, b in zip(wps, bps))
    max_np = max(w.shape[1] for w in wps)
    act_bytes = (2 * tm * K0p * itemsize
                 + 2 * tm * Np_out * out_itemsize
                 + 2 * tm * max_np * 4)
    use_fused = (not force_tiled) and (weight_bytes + act_bytes
                                       <= fused_weight_budget_bytes)

    if use_fused:
        out_p = _fused_mlp(xp, wps, bps, tm=tm, out_dtype=x.dtype,
                           vmem_limit=vmem_limit)
    else:
        # TODO(synk): replace this per-layer HBM round-trip with one kernel that
        # keeps the activation row tile resident and streams weight K/N tiles
        # via pltpu.emit_pipeline (bias+ReLU fused at the last K step).
        h = xp
        for i, (wp, bp) in enumerate(zip(wps, bps)):
            last = i == num_layers - 1
            h = _tiled_linear(h, wp, bp, apply_relu=not last, tm=tm,
                              out_dtype=(x.dtype if last else cdt),
                              vmem_limit=vmem_limit)
        out_p = h

    out = out_p[:M, :out_dim]
    return out.reshape(*lead_shape, out_dim)


# ---------------------------------------------------------------------------
# Params / reference
# ---------------------------------------------------------------------------
def init_mlp_params(key, input_dim, hidden_dim, output_dim, num_layers):
    """Matches the PyTorch module's layer shapes; weights stored as (in, out)."""
    h = [hidden_dim] * (num_layers - 1)
    dims_in = [input_dim] + h
    dims_out = h + [output_dim]
    params = []
    for n, k in zip(dims_in, dims_out):
        key, wk, bk = jax.random.split(key, 3)
        bound = 1.0 / (n ** 0.5)  # PyTorch default Linear init: U(-1/sqrt(n), 1/sqrt(n))
        w = jax.random.uniform(wk, (n, k), jnp.float32, -bound, bound)
        b = jax.random.uniform(bk, (k,), jnp.float32, -bound, bound)
        params.append((w, b))
    return params


def mlp_reference(x, params):
    num_layers = len(params)
    for i, (w, b) in enumerate(params):
        x = x @ w + b
        if i < num_layers - 1:
            x = jnp.maximum(x, 0.0)
    return x


if __name__ == "__main__":
    key = jax.random.PRNGKey(0)
    key, xk = jax.random.split(key)

    # MLP(input_dim=32, hidden_dim=64, output_dim=16, num_layers=3) on (2, 8, 32).
    input_dim, hidden_dim, output_dim, num_layers = 32, 64, 16, 3
    x = jax.random.normal(xk, (2, 8, input_dim), dtype=jnp.float32)
    params = init_mlp_params(key, input_dim, hidden_dim, output_dim, num_layers)

    ref = mlp_reference(x, params)

    # Default path: bf16 operands, f32 MXU accumulation, fused single kernel,
    # weights padded/cast once via prepare_mlp_params.
    prepared = prepare_mlp_params(params, compute_dtype=jnp.bfloat16)
    out_bf16 = jax.block_until_ready(mlp_forward(x, prepared))
    assert out_bf16.shape == (2, 8, output_dim)
    assert jnp.allclose(out_bf16, ref, atol=5e-2, rtol=5e-2), "fused bf16 path mismatch"

    # f32-compute fused path (tight tolerance vs. the f32 reference).
    out_f32 = jax.block_until_ready(mlp_forward(x, params, compute_dtype=jnp.float32))
    assert jnp.allclose(out_f32, ref, atol=1e-5, rtol=1e-5), "fused f32 path mismatch"

    # Shape-robust tiled fallback path (3-D grid + f32 accumulator).
    out_tiled = jax.block_until_ready(
        mlp_forward(x, params, compute_dtype=jnp.float32, force_tiled=True))
    assert jnp.allclose(out_tiled, ref, atol=1e-5, rtol=1e-5), "tiled path mismatch"

    print("KERNEL_OK")
</pallas_src>

<mosaic_0001>
module attributes {stable_mosaic.version = 11 : i64} {
  func.func @_fused_mlp_kernel(%arg0: i32, %arg1: memref<16x128xbf16, #tpu.memory_space<vmem>>, %arg2: memref<128x128xbf16, #tpu.memory_space<vmem>>, %arg3: memref<1x128xbf16, #tpu.memory_space<vmem>>, %arg4: memref<128x128xbf16, #tpu.memory_space<vmem>>, %arg5: memref<1x128xbf16, #tpu.memory_space<vmem>>, %arg6: memref<128x128xbf16, #tpu.memory_space<vmem>>, %arg7: memref<1x128xbf16, #tpu.memory_space<vmem>>, %arg8: memref<16x128xf32, #tpu.memory_space<vmem>>) attributes {dimension_semantics = [#tpu.dimension_semantics<parallel>], iteration_bounds = array<i64: 1>, scalar_prefetch = 0 : i64, scratch_operands = 0 : i64, tpu.core_type = #tpu.core_type<tc>, window_params = [{transform_indices = @transform_0, window_bounds = array<i64: 16, 128>}, {pipeline_mode = #tpu.pipeline_mode<synchronous>, transform_indices = @transform_1, window_bounds = array<i64: 128, 128>}, {pipeline_mode = #tpu.pipeline_mode<synchronous>, transform_indices = @transform_2, window_bounds = array<i64: 1, 128>}, {pipeline_mode = #tpu.pipeline_mode<synchronous>, transform_indices = @transform_3, window_bounds = array<i64: 128, 128>}, {pipeline_mode = #tpu.pipeline_mode<synchronous>, transform_indices = @transform_4, window_bounds = array<i64: 1, 128>}, {pipeline_mode = #tpu.pipeline_mode<synchronous>, transform_indices = @transform_5, window_bounds = array<i64: 128, 128>}, {pipeline_mode = #tpu.pipeline_mode<synchronous>, transform_indices = @transform_6, window_bounds = array<i64: 1, 128>}, {transform_indices = @transform_7, window_bounds = array<i64: 16, 128>}]} {
    %c0 = arith.constant 0 : index
    %c0_0 = arith.constant 0 : index
    %0 = vector.load %arg1[%c0, %c0_0] : memref<16x128xbf16, #tpu.memory_space<vmem>>, vector<16x128xbf16>
    %c0_1 = arith.constant 0 : index
    %c0_2 = arith.constant 0 : index
    %1 = vector.load %arg2[%c0_1, %c0_2] : memref<128x128xbf16, #tpu.memory_space<vmem>>, vector<128x128xbf16>
    %cst = arith.constant dense<0.000000e+00> : vector<16x128xf32>
    %2 = tpu.matmul %0, %1, %cst {dimension_numbers = #tpu.dot_dimension_numbers<[1], [0], [0], [1], [0, 0, 1, 1], [], []>} : vector<16x128xbf16>, vector<128x128xbf16>, vector<16x128xf32> -> vector<16x128xf32>
    %c0_3 = arith.constant 0 : index
    %c0_4 = arith.constant 0 : index
    %3 = vector.load %arg3[%c0_3, %c0_4] : memref<1x128xbf16, #tpu.memory_space<vmem>>, vector<1x128xbf16>
    %4 = arith.extf %3 : vector<1x128xbf16> to vector<1x128xf32>
    %5 = vector.broadcast %4 : vector<1x128xf32> to vector<16x128xf32>
    %6 = arith.addf %2, %5 : vector<16x128xf32>
    %cst_5 = arith.constant 0.000000e+00 : f32
    %7 = vector.broadcast %cst_5 : f32 to vector<16x128xf32>
    %8 = arith.maximumf %6, %7 : vector<16x128xf32>
    %9 = arith.truncf %8 : vector<16x128xf32> to vector<16x128xbf16>
    %c0_6 = arith.constant 0 : index
    %c0_7 = arith.constant 0 : index
    %10 = vector.load %arg4[%c0_6, %c0_7] : memref<128x128xbf16, #tpu.memory_space<vmem>>, vector<128x128xbf16>
    %cst_8 = arith.constant dense<0.000000e+00> : vector<16x128xf32>
    %11 = tpu.matmul %9, %10, %cst_8 {dimension_numbers = #tpu.dot_dimension_numbers<[1], [0], [0], [1], [0, 0, 1, 1], [], []>} : vector<16x128xbf16>, vector<128x128xbf16>, vector<16x128xf32> -> vector<16x128xf32>
    %c0_9 = arith.constant 0 : index
    %c0_10 = arith.constant 0 : index
    %12 = vector.load %arg5[%c0_9, %c0_10] : memref<1x128xbf16, #tpu.memory_space<vmem>>, vector<1x128xbf16>
    %13 = arith.extf %12 : vector<1x128xbf16> to vector<1x128xf32>
    %14 = vector.broadcast %13 : vector<1x128xf32> to vector<16x128xf32>
    %15 = arith.addf %11, %14 : vector<16x128xf32>
    %cst_11 = arith.constant 0.000000e+00 : f32
    %16 = vector.broadcast %cst_11 : f32 to vector<16x128xf32>
    %17 = arith.maximumf %15, %16 : vector<16x128xf32>
    %18 = arith.truncf %17 : vector<16x128xf32> to vector<16x128xbf16>
    %c0_12 = arith.constant 0 : index
    %c0_13 = arith.constant 0 : index
    %19 = vector.load %arg6[%c0_12, %c0_13] : memref<128x128xbf16, #tpu.memory_space<vmem>>, vector<128x128xbf16>
    %cst_14 = arith.constant dense<0.000000e+00> : vector<16x128xf32>
    %20 = tpu.matmul %18, %19, %cst_14 {dimension_numbers = #tpu.dot_dimension_numbers<[1], [0], [0], [1], [0, 0, 1, 1], [], []>} : vector<16x128xbf16>, vector<128x128xbf16>, vector<16x128xf32> -> vector<16x128xf32>
    %c0_15 = arith.constant 0 : index
    %c0_16 = arith.constant 0 : index
    %21 = vector.load %arg7[%c0_15, %c0_16] : memref<1x128xbf16, #tpu.memory_space<vmem>>, vector<1x128xbf16>
    %22 = arith.extf %21 : vector<1x128xbf16> to vector<1x128xf32>
    %23 = vector.broadcast %22 : vector<1x128xf32> to vector<16x128xf32>
    %24 = arith.addf %20, %23 : vector<16x128xf32>
    %c0_17 = arith.constant 0 : index
    %c0_18 = arith.constant 0 : index
    %25 = vector.load %arg8[%c0_17, %c0_18] : memref<16x128xf32, #tpu.memory_space<vmem>>, vector<16x128xf32>
    tpu.vector_store %arg8[%c0_17, %c0_18], %24 {strides = array<i32>} : memref<16x128xf32, #tpu.memory_space<vmem>>, vector<16x128xf32>,
    return
  }
  func.func @transform_0(%arg0: i32) -> (i32, i32) {
    %c0_i32 = arith.constant 0 : i32
    %c0_i32_0 = arith.constant 0 : i32
    return %arg0, %c0_i32 : i32, i32
  }
  func.func @transform_1(%arg0: i32) -> (i32, i32) {
    %c0_i32 = arith.constant 0 : i32
    %c0_i32_0 = arith.constant 0 : i32
    %c0_i32_1 = arith.constant 0 : i32
    return %c0_i32, %c0_i32_0 : i32, i32
  }
  func.func @transform_2(%arg0: i32) -> (i32, i32) {
    %c0_i32 = arith.constant 0 : i32
    %c0_i32_0 = arith.constant 0 : i32
    %c0_i32_1 = arith.constant 0 : i32
    return %c0_i32, %c0_i32_0 : i32, i32
  }
  func.func @transform_3(%arg0: i32) -> (i32, i32) {
    %c0_i32 = arith.constant 0 : i32
    %c0_i32_0 = arith.constant 0 : i32
    %c0_i32_1 = arith.constant 0 : i32
    return %c0_i32, %c0_i32_0 : i32, i32
  }
  func.func @transform_4(%arg0: i32) -> (i32, i32) {
    %c0_i32 = arith.constant 0 : i32
    %c0_i32_0 = arith.constant 0 : i32
    %c0_i32_1 = arith.constant 0 : i32
    return %c0_i32, %c0_i32_0 : i32, i32
  }
  func.func @transform_5(%arg0: i32) -> (i32, i32) {
    %c0_i32 = arith.constant 0 : i32
    %c0_i32_0 = arith.constant 0 : i32
    %c0_i32_1 = arith.constant 0 : i32
    return %c0_i32, %c0_i32_0 : i32, i32
  }
  func.func @transform_6(%arg0: i32) -> (i32, i32) {
    %c0_i32 = arith.constant 0 : i32
    %c0_i32_0 = arith.constant 0 : i32
    %c0_i32_1 = arith.constant 0 : i32
    return %c0_i32, %c0_i32_0 : i32, i32
  }
  func.func @transform_7(%arg0: i32) -> (i32, i32) {
    %c0_i32 = arith.constant 0 : i32
    %c0_i32_0 = arith.constant 0 : i32
    return %arg0, %c0_i32 : i32, i32
  }
}

</mosaic_0001>

<llo_original>
// kernel: tpu_custom_call.1
$region0: #{tpu_custom_call.1}
  #allocation0 [shape = 'u32[]', space=smem, size = 0x4, offset = 0x4, fixed_abs, tag = 'smem constant byte address 0x4 - core index']
  #allocation1 [shape = 'u32[144,128]{1,0:T(1,128)}', space=vmem, size = 0x12000, scoped, tag = 'internal scratch']
  %s0 = inlined_call_operand.hbm [shape: bf16[16,128], index: 0, kind: input, shape index: {}]
  %s1 = inlined_call_operand.hbm [shape: bf16[128,128], index: 1, kind: input, shape index: {}]
  %s2 = inlined_call_operand.vmem [shape: bf16[1,128], index: 2, kind: input, shape index: {}]
  %s3 = inlined_call_operand.hbm [shape: bf16[128,128], index: 3, kind: input, shape index: {}]
  %s4 = inlined_call_operand.vmem [shape: bf16[1,128], index: 4, kind: input, shape index: {}]
  %s5 = inlined_call_operand.hbm [shape: bf16[128,128], index: 5, kind: input, shape index: {}]
  %s6 = inlined_call_operand.vmem [shape: bf16[1,128], index: 6, kind: input, shape index: {}]
  %s7 = inlined_call_operand.hbm [shape: f32[16,128], index: 7, kind: output, shape index: {}]
  %s8 = sld [smem:[#allocation0]]
  $region54: #{tpu_custom_call.1} parent=0
    _
  %s10 = ssub.s32 1, %s8
  %s11 = scalar_select 0, %s10, %s8
  $region1: #{tpu_custom_call.1} parent=0
    #allocation2 [shape = 'u8[4096]{0}', space=vmem, size = 0x1000, scoped, tag = 'input window, operand 0, single buffered']
    #allocation3 [shape = 's32[1]{0}', space=sflag, size = 0x4, scoped, tag = 'scoped memory for tpu_custom_call.1']
    #allocation4 [shape = 's32[1]{0}', space=sflag, size = 0x4, scoped, tag = 'scoped memory for tpu_custom_call.1']
    #allocation5 [shape = 'u8[32768]{0}', space=vmem, size = 0x8000, scoped, tag = 'input window, operand 1, single buffered']
    #allocation6 [shape = 's32[1]{0}', space=sflag, size = 0x4, scoped, tag = 'scoped memory for tpu_custom_call.1']
    #allocation7 [shape = 'u8[32768]{0}', space=vmem, size = 0x8000, scoped, tag = 'input window, operand 3, single buffered']
    #allocation8 [shape = 'u8[32768]{0}', space=vmem, size = 0x8000, scoped, tag = 'input window, operand 5, single buffered']
    #allocation9 [shape = 's32[1]{0}', space=sflag, size = 0x4, scoped, tag = 'scoped memory for tpu_custom_call.1']
    #allocation10 [shape = 'u8[8192]{0}', space=vmem, size = 0x2000, scoped, tag = 'output window, operand 0, single buffered']
    %12 = vsyncpa [#allocation3], 0
    %13 = vsyncpa [#allocation6], 0
    %14 = vsyncpa [#allocation9], 0
    %15 = vsyncpa [#allocation4], 0
    // Predicated region
    $region2: #{tpu_custom_call.1} parent=1 // pred_check
      _
    $region3: #{tpu_custom_call.1} parent=1 // pred_check_branch
      %17 = sbr.rel (0) target = $region5
    $region4: #{tpu_custom_call.1} parent=1 // pred_region
      %s19 = ssub.s32 128, 128
      %20 = vsyncadd [#allocation3], %s19
      %s21 = sshll.u32 [#allocation2], 4
      %s22 = int_to_ptr.vmem [resolvable:$true] %s21
      %27 = dma.hbm_to_vmem [thread:$0]  %s0, 128, %s22, [#allocation3], 64, 64, 4
    $region5: #{tpu_custom_call.1} parent=1 // pred_fallthru
      _
    // Predicated region
    $region6: #{tpu_custom_call.1} parent=1 // pred_check
      _
    $region7: #{tpu_custom_call.1} parent=1 // pred_check_branch
      %29 = sbr.rel (0) target = $region9
    $region8: #{tpu_custom_call.1} parent=1 // pred_region
      %s31 = ssub.s32 1024, 1024
      %32 = vsyncadd [#allocation6], %s31
      %s33 = sshll.u32 [#allocation5], 4
      %s34 = int_to_ptr.vmem [resolvable:$true] %s33
      %39 = dma.hbm_to_vmem [thread:$0]  %s1, 1024, %s34, [#allocation6], 64, 64, 4
    $region9: #{tpu_custom_call.1} parent=1 // pred_fallthru
      _
    // Predicated region
    $region10: #{tpu_custom_call.1} parent=1 // pred_check
      _
    $region11: #{tpu_custom_call.1} parent=1 // pred_check_branch
      %41 = sbr.rel (0) target = $region13
    $region12: #{tpu_custom_call.1} parent=1 // pred_region
      _
    $region13: #{tpu_custom_call.1} parent=1 // pred_fallthru
      _
    // Predicated region
    $region14: #{tpu_custom_call.1} parent=1 // pred_check
      _
    $region15: #{tpu_custom_call.1} parent=1 // pred_check_branch
      %43 = sbr.rel (0) target = $region17
    $region16: #{tpu_custom_call.1} parent=1 // pred_region
      %s45 = ssub.s32 1024, 1024
      %46 = vsyncadd [#allocation6], %s45
      %s47 = sshll.u32 [#allocation7], 4
      %s48 = int_to_ptr.vmem [resolvable:$true] %s47
      %53 = dma.hbm_to_vmem [thread:$0]  %s3, 1024, %s48, [#allocation6], 64, 64, 4
    $region17: #{tpu_custom_call.1} parent=1 // pred_fallthru
      _
    // Predicated region
    $region18: #{tpu_custom_call.1} parent=1 // pred_check
      _
    $region19: #{tpu_custom_call.1} parent=1 // pred_check_branch
      %55 = sbr.rel (0) target = $region21
    $region20: #{tpu_custom_call.1} parent=1 // pred_region
      _
    $region21: #{tpu_custom_call.1} parent=1 // pred_fallthru
      _
    // Predicated region
    $region22: #{tpu_custom_call.1} parent=1 // pred_check
      _
    $region23: #{tpu_custom_call.1} parent=1 // pred_check_branch
      %57 = sbr.rel (0) target = $region25
    $region24: #{tpu_custom_call.1} parent=1 // pred_region
      %s59 = ssub.s32 1024, 1024
      %60 = vsyncadd [#allocation9], %s59
      %s61 = sshll.u32 [#allocation8], 4
      %s62 = int_to_ptr.vmem [resolvable:$true] %s61
      %67 = dma.hbm_to_vmem [thread:$0]  %s5, 1024, %s62, [#allocation9], 64, 64, 4
    $region25: #{tpu_custom_call.1} parent=1 // pred_fallthru
      _
    // Predicated region
    $region26: #{tpu_custom_call.1} parent=1 // pred_check
      _
    $region27: #{tpu_custom_call.1} parent=1 // pred_check_branch
      %69 = sbr.rel (0) target = $region29
    $region28: #{tpu_custom_call.1} parent=1 // pred_region
      _
    $region29: #{tpu_custom_call.1} parent=1 // pred_fallthru
      _
    // Predicated region
    $region30: #{tpu_custom_call.1} parent=1 // pred_check
      _
    $region31: #{tpu_custom_call.1} parent=1 // pred_check_branch
      %71 = sbr.rel (0) target = $region33
    $region32: #{tpu_custom_call.1} parent=1 // pred_region
      %72 = dma.done [#allocation3], 128
    $region33: #{tpu_custom_call.1} parent=1 // pred_fallthru
      _
    // Predicated region
    $region34: #{tpu_custom_call.1} parent=1 // pred_check
      _
    $region35: #{tpu_custom_call.1} parent=1 // pred_check_branch
      %74 = sbr.rel (0) target = $region37
    $region36: #{tpu_custom_call.1} parent=1 // pred_region
      %75 = dma.done [#allocation6], 1024
    $region37: #{tpu_custom_call.1} parent=1 // pred_fallthru
      _
    // Predicated region
    $region38: #{tpu_custom_call.1} parent=1 // pred_check
      _
    $region39: #{tpu_custom_call.1} parent=1 // pred_check_branch
      %77 = sbr.rel (0) target = $region41
    $region40: #{tpu_custom_call.1} parent=1 // pred_region
      %78 = dma.done [#allocation6], 1024
    $region41: #{tpu_custom_call.1} parent=1 // pred_fallthru
      _
    // Predicated region
    $region42: #{tpu_custom_call.1} parent=1 // pred_check
      _
    $region43: #{tpu_custom_call.1} parent=1 // pred_check_branch
      %80 = sbr.rel (0) target = $region45
    $region44: #{tpu_custom_call.1} parent=1 // pred_region
      %81 = dma.done [#allocation9], 1024
    $region45: #{tpu_custom_call.1} parent=1 // pred_fallthru
      _
    %v83 = vld [vmem:[#allocation2] sm:$0xf]
    %v84 = vld [vmem:[#allocation2 + $0x4] sm:$0xf]
    %v85 = vld [vmem:[#allocation5] sm:$0xf]
    %v86 = vld [vmem:[#allocation5 + $0x4] sm:$0xf]
    %v87 = vld [vmem:[#allocation5 + $0x8] sm:$0xf]
    %v88 = vld [vmem:[#allocation5 + $0xc] sm:$0xf]
    %v89 = vld [vmem:[#allocation5 + $0x10] sm:$0xf]
    %v90 = vld [vmem:[#allocation5 + $0x14] sm:$0xf]
    %v91 = vld [vmem:[#allocation5 + $0x18] sm:$0xf]
    %v92 = vld [vmem:[#allocation5 + $0x1c] sm:$0xf]
    %v93 = vld [vmem:[#allocation5 + $0x20] sm:$0xf]
    %v94 = vld [vmem:[#allocation5 + $0x24] sm:$0xf]
    %v95 = vld [vmem:[#allocation5 + $0x28] sm:$0xf]
    %v96 = vld [vmem:[#allocation5 + $0x2c] sm:$0xf]
    %v97 = vld [vmem:[#allocation5 + $0x30] sm:$0xf]
    %v98 = vld [vmem:[#allocation5 + $0x34] sm:$0xf]
    %v99 = vld [vmem:[#allocation5 + $0x38] sm:$0xf]
    %v100 = vld [vmem:[#allocation5 + $0x3c] sm:$0xf]
    %v101 = vld [vmem:[%s2] sm:$0x1]
    %v102 = vunpack.c.l.bf16 %v101
    %v103 = vlaneseq
    %v104 = vshrl.u32 %v103, 7
    %v105 = vsub.s32 0, %v104
    %v106 = vrot.slane %v102, %v105
    %v109 = vunpack.c.l.b16 %v83
    %v110 = vunpack.c.l.b16 %v84
    %v111 = vpack.c.b16 %v110, %v109
    %v129 = vunpack.c.l.b16 %v85
    %v130 = vunpack.c.l.b16 %v86
    %v131 = vunpack.c.l.b16 %v87
    %v132 = vunpack.c.l.b16 %v88
    %v133 = vunpack.c.l.b16 %v89
    %v134 = vunpack.c.l.b16 %v90
    %v135 = vunpack.c.l.b16 %v91
    %v136 = vunpack.c.l.b16 %v92
    %v137 = vunpack.c.l.b16 %v93
    %v138 = vunpack.c.l.b16 %v94
    %v139 = vunpack.c.l.b16 %v95
    %v140 = vunpack.c.l.b16 %v96
    %v141 = vunpack.c.l.b16 %v97
    %v142 = vunpack.c.l.b16 %v98
    %v143 = vunpack.c.l.b16 %v99
    %v144 = vunpack.c.l.b16 %v100
    %v145 = vpack.c.b16 %v130, %v129
    %v146 = vpack.c.b16 %v132, %v131
    %v147 = vpack.c.b16 %v134, %v133
    %v148 = vpack.c.b16 %v136, %v135
    %v149 = vpack.c.b16 %v138, %v137
    %v150 = vpack.c.b16 %v140, %v139
    %v151 = vpack.c.b16 %v142, %v141
    %v152 = vpack.c.b16 %v144, %v143
    %161 = vmatprep.subr.bf16.mxu0 0
    %162 = vmatpush1.bf16.msra.mxu0 %v145
    %163 = vmatprep.subr.bf16.mxu0 0
    %164 = vmatpush1.bf16.msra.mxu0 %v146
    %165 = vmatprep.subr.bf16.mxu0 0
    %166 = vmatpush1.bf16.msra.mxu0 %v147
    %167 = vmatprep.subr.bf16.mxu0 0
    %168 = vmatpush1.bf16.msra.mxu0 %v148
    %169 = vmatprep.subr.bf16.mxu0 0
    %170 = vmatpush1.bf16.msra.mxu0 %v149
    %171 = vmatprep.subr.bf16.mxu0 0
    %172 = vmatpush1.bf16.msra.mxu0 %v150
    %173 = vmatprep.subr.bf16.mxu0 0
    %174 = vmatpush1.bf16.msra.mxu0 %v151
    %175 = vmatprep.subr.bf16.mxu0 0
    %176 = vmatpush1.bf16.msra.mxu0 %v152
    %177 = vmatprep.subr.bf16.mxu0 0
    %178 = vmatpush1.bf16.msra.mxu0 0
    %179 = vmatprep.subr.bf16.mxu0 0
    %180 = vmatpush1.bf16.msra.mxu0 0
    %181 = vmatprep.subr.bf16.mxu0 0
    %182 = vmatpush1.bf16.msra.mxu0 0
    %183 = vmatprep.subr.bf16.mxu0 0
    %184 = vmatpush1.bf16.msra.mxu0 0
    %185 = vmatprep.subr.bf16.mxu0 0
    %186 = vmatpush1.bf16.msra.mxu0 0
    %187 = vmatprep.subr.bf16.mxu0 0
    %188 = vmatpush1.bf16.msra.mxu0 0
    %189 = vmatprep.subr.bf16.mxu0 0
    %190 = vmatpush1.bf16.msra.mxu0 0
    %191 = vmatprep.subr.bf16.mxu0 0
    %192 = vmatpush1.bf16.msra.mxu0 0
    %193 = vmatprep.mubr.bf16.mxu0 0
    %194 = vmatmul.mubr.bf16.gmra.mrb[0].mxu0 %v111
    %v195 = vpop.f32.mrb[0].mxu0
    %v196 = vadd.f32 %v106, %v195
    %v197 = vpop.f32.mrb[0].mxu0
    %v198 = vpop.f32.mrb[0].mxu0
    %v199 = vadd.f32 %v106, %v198
    %v200 = vpop.f32.mrb[0].mxu0
    %201 = vdwg.mxu0
    %v202 = vmax.f32 %v196, 0.0
    %v203 = vmax.f32 %v199, 0.0
    %v204 = vpack.c.bf16 %v203, %v202
    %v205 = vld [vmem:[#allocation7] sm:$0xf]
    %v206 = vld [vmem:[#allocation7 + $0x4] sm:$0xf]
    %v207 = vld [vmem:[#allocation7 + $0x8] sm:$0xf]
    %v208 = vld [vmem:[#allocation7 + $0xc] sm:$0xf]
    %v209 = vld [vmem:[#allocation7 + $0x10] sm:$0xf]
    %v210 = vld [vmem:[#allocation7 + $0x14] sm:$0xf]
    %v211 = vld [vmem:[#allocation7 + $0x18] sm:$0xf]
    %v212 = vld [vmem:[#allocation7 + $0x1c] sm:$0xf]
    %v213 = vld [vmem:[#allocation7 + $0x20] sm:$0xf]
    %v214 = vld [vmem:[#allocation7 + $0x24] sm:$0xf]
    %v215 = vld [vmem:[#allocation7 + $0x28] sm:$0xf]
    %v216 = vld [vmem:[#allocation7 + $0x2c] sm:$0xf]
    %v217 = vld [vmem:[#allocation7 + $0x30] sm:$0xf]
    %v218 = vld [vmem:[#allocation7 + $0x34] sm:$0xf]
    %v219 = vld [vmem:[#allocation7 + $0x38] sm:$0xf]
    %v220 = vld [vmem:[#allocation7 + $0x3c] sm:$0xf]
    %v221 = vld [vmem:[%s4] sm:$0x1]
    %v222 = vunpack.c.l.bf16 %v221
    %v223 = vlaneseq
    %v224 = vshrl.u32 %v223, 7
    %v225 = vsub.s32 0, %v224
    %v226 = vrot.slane %v222, %v225
    %v243 = vunpack.c.l.b16 %v205
    %v244 = vunpack.c.l.b16 %v206
    %v245 = vunpack.c.l.b16 %v207
    %v246 = vunpack.c.l.b16 %v208
    %v247 = vunpack.c.l.b16 %v209
    %v248 = vunpack.c.l.b16 %v210
    %v249 = vunpack.c.l.b16 %v211
    %v250 = vunpack.c.l.b16 %v212
    %v251 = vunpack.c.l.b16 %v213
    %v252 = vunpack.c.l.b16 %v214
    %v253 = vunpack.c.l.b16 %v215
    %v254 = vunpack.c.l.b16 %v216
    %v255 = vunpack.c.l.b16 %v217
    %v256 = vunpack.c.l.b16 %v218
    %v257 = vunpack.c.l.b16 %v219
    %v258 = vunpack.c.l.b16 %v220
    %v259 = vpack.c.b16 %v244, %v243
    %v260 = vpack.c.b16 %v246, %v245
    %v261 = vpack.c.b16 %v248, %v247
    %v262 = vpack.c.b16 %v250, %v249
    %v263 = vpack.c.b16 %v252, %v251
    %v264 = vpack.c.b16 %v254, %v253
    %v265 = vpack.c.b16 %v256, %v255
    %v266 = vpack.c.b16 %v258, %v257
    %275 = vmatprep.subr.bf16.mxu0 0
    %276 = vmatpush1.bf16.msra.mxu0 %v259
    %277 = vmatprep.subr.bf16.mxu0 0
    %278 = vmatpush1.bf16.msra.mxu0 %v260
    %279 = vmatprep.subr.bf16.mxu0 0
    %280 = vmatpush1.bf16.msra.mxu0 %v261
    %281 = vmatprep.subr.bf16.mxu0 0
    %282 = vmatpush1.bf16.msra.mxu0 %v262
    %283 = vmatprep.subr.bf16.mxu0 0
    %284 = vmatpush1.bf16.msra.mxu0 %v263
    %285 = vmatprep.subr.bf16.mxu0 0
    %286 = vmatpush1.bf16.msra.mxu0 %v264
    %287 = vmatprep.subr.bf16.mxu0 0
    %288 = vmatpush1.bf16.msra.mxu0 %v265
    %289 = vmatprep.subr.bf16.mxu0 0
    %290 = vmatpush1.bf16.msra.mxu0 %v266
    %291 = vmatprep.subr.bf16.mxu0 0
    %292 = vmatpush1.bf16.msra.mxu0 0
    %293 = vmatprep.subr.bf16.mxu0 0
    %294 = vmatpush1.bf16.msra.mxu0 0
    %295 = vmatprep.subr.bf16.mxu0 0
    %296 = vmatpush1.bf16.msra.mxu0 0
    %297 = vmatprep.subr.bf16.mxu0 0
    %298 = vmatpush1.bf16.msra.mxu0 0
    %299 = vmatprep.subr.bf16.mxu0 0
    %300 = vmatpush1.bf16.msra.mxu0 0
    %301 = vmatprep.subr.bf16.mxu0 0
    %302 = vmatpush1.bf16.msra.mxu0 0
    %303 = vmatprep.subr.bf16.mxu0 0
    %304 = vmatpush1.bf16.msra.mxu0 0
    %305 = vmatprep.subr.bf16.mxu0 0
    %306 = vmatpush1.bf16.msra.mxu0 0
    %307 = vmatprep.mubr.bf16.mxu0 0
    %308 = vmatmul.mubr.bf16.gmra.mrb[0].mxu0 %v204
    %v309 = vpop.f32.mrb[0].mxu0
    %v310 = vadd.f32 %v226, %v309
    %v311 = vpop.f32.mrb[0].mxu0
    %v312 = vpop.f32.mrb[0].mxu0
    %v313 = vadd.f32 %v226, %v312
    %v314 = vpop.f32.mrb[0].mxu0
    %315 = vdwg.mxu0
    %v316 = vmax.f32 %v310, 0.0
    %v317 = vmax.f32 %v313, 0.0
    %v318 = vpack.c.bf16 %v317, %v316
    %v319 = vld [vmem:[#allocation8] sm:$0xf]
    %v320 = vld [vmem:[#allocation8 + $0x4] sm:$0xf]
    %v321 = vld [vmem:[#allocation8 + $0x8] sm:$0xf]
    %v322 = vld [vmem:[#allocation8 + $0xc] sm:$0xf]
    %v323 = vld [vmem:[#allocation8 + $0x10] sm:$0xf]
    %v324 = vld [vmem:[#allocation8 + $0x14] sm:$0xf]
    %v325 = vld [vmem:[#allocation8 + $0x18] sm:$0xf]
    %v326 = vld [vmem:[#allocation8 + $0x1c] sm:$0xf]
    %v327 = vld [vmem:[#allocation8 + $0x20] sm:$0xf]
    %v328 = vld [vmem:[#allocation8 + $0x24] sm:$0xf]
    %v329 = vld [vmem:[#allocation8 + $0x28] sm:$0xf]
    %v330 = vld [vmem:[#allocation8 + $0x2c] sm:$0xf]
    %v331 = vld [vmem:[#allocation8 + $0x30] sm:$0xf]
    %v332 = vld [vmem:[#allocation8 + $0x34] sm:$0xf]
    %v333 = vld [vmem:[#allocation8 + $0x38] sm:$0xf]
    %v334 = vld [vmem:[#allocation8 + $0x3c] sm:$0xf]
    %v335 = vld [vmem:[%s6] sm:$0x1]
    %v336 = vunpack.c.l.bf16 %v335
    %v337 = vlaneseq
    %v338 = vshrl.u32 %v337, 7
    %v339 = vsub.s32 0, %v338
    %v340 = vrot.slane %v336, %v339
    %v357 = vunpack.c.l.b16 %v319
    %v358 = vunpack.c.l.b16 %v320
    %v359 = vunpack.c.l.b16 %v321
    %v360 = vunpack.c.l.b16 %v322
    %v361 = vunpack.c.l.b16 %v323
    %v362 = vunpack.c.l.b16 %v324
    %v363 = vunpack.c.l.b16 %v325
    %v364 = vunpack.c.l.b16 %v326
    %v365 = vunpack.c.l.b16 %v327
    %v366 = vunpack.c.l.b16 %v328
    %v367 = vunpack.c.l.b16 %v329
    %v368 = vunpack.c.l.b16 %v330
    %v369 = vunpack.c.l.b16 %v331
    %v370 = vunpack.c.l.b16 %v332
    %v371 = vunpack.c.l.b16 %v333
    %v372 = vunpack.c.l.b16 %v334
    %v373 = vpack.c.b16 %v358, %v357
    %v374 = vpack.c.b16 %v360, %v359
    %v375 = vpack.c.b16 %v362, %v361
    %v376 = vpack.c.b16 %v364, %v363
    %v377 = vpack.c.b16 %v366, %v365
    %v378 = vpack.c.b16 %v368, %v367
    %v379 = vpack.c.b16 %v370, %v369
    %v380 = vpack.c.b16 %v372, %v371
    %389 = vmatprep.subr.bf16.mxu0 0
    %390 = vmatpush1.bf16.msra.mxu0 %v373
    %391 = vmatprep.subr.bf16.mxu0 0
    %392 = vmatpush1.bf16.msra.mxu0 %v374
    %393 = vmatprep.subr.bf16.mxu0 0
    %394 = vmatpush1.bf16.msra.mxu0 %v375
    %395 = vmatprep.subr.bf16.mxu0 0
    %396 = vmatpush1.bf16.msra.mxu0 %v376
    %397 = vmatprep.subr.bf16.mxu0 0
    %398 = vmatpush1.bf16.msra.mxu0 %v377
    %399 = vmatprep.subr.bf16.mxu0 0
    %400 = vmatpush1.bf16.msra.mxu0 %v378
    %401 = vmatprep.subr.bf16.mxu0 0
    %402 = vmatpush1.bf16.msra.mxu0 %v379
    %403 = vmatprep.subr.bf16.mxu0 0
    %404 = vmatpush1.bf16.msra.mxu0 %v380
    %405 = vmatprep.subr.bf16.mxu0 0
    %406 = vmatpush1.bf16.msra.mxu0 0
    %407 = vmatprep.subr.bf16.mxu0 0
    %408 = vmatpush1.bf16.msra.mxu0 0
    %409 = vmatprep.subr.bf16.mxu0 0
    %410 = vmatpush1.bf16.msra.mxu0 0
    %411 = vmatprep.subr.bf16.mxu0 0
    %412 = vmatpush1.bf16.msra.mxu0 0
    %413 = vmatprep.subr.bf16.mxu0 0
    %414 = vmatpush1.bf16.msra.mxu0 0
    %415 = vmatprep.subr.bf16.mxu0 0
    %416 = vmatpush1.bf16.msra.mxu0 0
    %417 = vmatprep.subr.bf16.mxu0 0
    %418 = vmatpush1.bf16.msra.mxu0 0
    %419 = vmatprep.subr.bf16.mxu0 0
    %420 = vmatpush1.bf16.msra.mxu0 0
    %421 = vmatprep.mubr.bf16.mxu0 0
    %422 = vmatmul.mubr.bf16.gmra.mrb[0].mxu0 %v318
    %v423 = vpop.f32.mrb[0].mxu0
    %v424 = vadd.f32 %v340, %v423
    %v425 = vpop.f32.mrb[0].mxu0
    %v426 = vpop.f32.mrb[0].mxu0
    %v427 = vadd.f32 %v340, %v426
    %v428 = vpop.f32.mrb[0].mxu0
    %429 = vdwg.mxu0
    %430 = vst [vmem:[#allocation10] sm:$0xff] %v424
    %431 = vst [vmem:[#allocation10 + $0x8] sm:$0xff] %v427
    // Predicated region
    $region46: #{tpu_custom_call.1} parent=1 // pred_check
      _
    $region47: #{tpu_custom_call.1} parent=1 // pred_check_branch
      %433 = sbr.rel (0) target = $region49
    $region48: #{tpu_custom_call.1} parent=1 // pred_region
      %s435 = ssub.s32 256, 256
      %436 = vsyncadd [#allocation4], %s435
      %s437 = sshll.u32 [#allocation10], 4
      %s438 = int_to_ptr.vmem [resolvable:$true] %s437
      %443 = dma.vmem_to_hbm [thread:$0]  %s438, 256, %s7, [#allocation4], 128, 128, 8
    $region49: #{tpu_custom_call.1} parent=1 // pred_fallthru
      _
    // Predicated region
    $region50: #{tpu_custom_call.1} parent=1 // pred_check
      _
    $region51: #{tpu_custom_call.1} parent=1 // pred_check_branch
      %445 = sbr.rel (0) target = $region53
    $region52: #{tpu_custom_call.1} parent=1 // pred_region
      %446 = dma.done [#allocation4], 256
    $region53: #{tpu_custom_call.1} parent=1 // pred_fallthru
      _
    %447 = vsyncpa [#allocation3], 1
    %448 = vsyncpa [#allocation6], 1
    %449 = vsyncpa [#allocation9], 1
    %450 = vsyncpa [#allocation4], 1

</llo_original>
